<compile_context>
chip_gen: v6e
topology: v6e:2x2x1
jax: 0.10.0
libtpu: 0.0.40
codegen_flags: <defaults>
</compile_context>

<pallas_src>
import functools
from typing import Callable, Optional

import jax
import jax.numpy as jnp
from jax.experimental import pallas as pl
from jax.experimental.pallas import tpu as pltpu


def _make_mlp_kernel(act_fn: Optional[Callable]):
    def _mlp_kernel(x_ref, w_in_ref, b_in_ref, w_out_ref, b_out_ref, o_ref):
        # x_ref:     (tm, d_model)        row tile of flattened activations
        # w_in_ref:  (d_model, d_mlp)     W_in pre-transposed (resident across grid)
        # b_in_ref:  (1, d_mlp)
        # w_out_ref: (d_mlp, d_model)     W_out pre-transposed (resident across grid)
        # b_out_ref: (1, d_model)
        # o_ref:     (tm, d_model)
        h = jnp.dot(x_ref[...], w_in_ref[...], preferred_element_type=jnp.float32)
        h = h + b_in_ref[...]
        if act_fn is not None:
            h = act_fn(h)
        out = jnp.dot(h.astype(w_out_ref.dtype), w_out_ref[...],
                      preferred_element_type=jnp.float32)
        o_ref[...] = (out + b_out_ref[...]).astype(o_ref.dtype)

    return _mlp_kernel


@functools.partial(jax.jit, static_argnames=("act_fn", "block_rows"))
def mlp(x: jax.Array,
        w_in: jax.Array,   # (d_mlp, d_model)   -- PyTorch layout
        b_in: jax.Array,   # (d_mlp,)
        w_out: jax.Array,  # (d_model, d_mlp)   -- PyTorch layout
        b_out: jax.Array,  # (d_model,)
        *,
        act_fn: Optional[Callable] = jax.nn.gelu,
        block_rows: int = 512) -> jax.Array:
    """Fused MLP: act(x @ W_in.T + b_in) @ W_out.T + b_out, x: (B, P, d_model)."""
    B, P, D = x.shape
    M = w_in.shape[0]  # d_mlp
    rows = B * P

    # Flatten to a lane-dense 2D problem; pre-transpose weights once in plain JAX glue
    # so the kernel runs plain (tm, D) @ (D, M) and (tm, M) @ (M, D) MXU matmuls.
    x2 = x.reshape(rows, D)
    w_in_t = w_in.T            # (D, M)
    w_out_t = w_out.T          # (M, D)
    b_in2 = b_in.reshape(1, M)
    b_out2 = b_out.reshape(1, D)

    # Row tile: biggest reasonable tile; full extent if the problem is small.
    # (block_rows is a multiple of 8, so the (8,128) sublane rule is satisfied;
    # partial trailing tiles are handled by Pallas output masking.)
    tm = rows if rows <= block_rows else block_rows
    grid = (pl.cdiv(rows, tm),)

    # TODO(synk): for very large d_mlp/d_model the resident weight blocks should be
    # tiled along d_mlp as a second ("arbitrary") grid axis to respect v7x's 64 MiB VMEM.
    out2 = pl.pallas_call(
        _make_mlp_kernel(act_fn),
        out_shape=jax.ShapeDtypeStruct((rows, D), x.dtype),
        grid_spec=pltpu.PrefetchScalarGridSpec(
            num_scalar_prefetch=0,
            grid=grid,
            in_specs=[
                pl.BlockSpec((tm, D), lambda i: (i, 0)),   # x row tile
                pl.BlockSpec((D, M), lambda i: (0, 0)),    # W_in^T (resident)
                pl.BlockSpec((1, M), lambda i: (0, 0)),    # b_in   (resident)
                pl.BlockSpec((M, D), lambda i: (0, 0)),    # W_out^T (resident)
                pl.BlockSpec((1, D), lambda i: (0, 0)),    # b_out  (resident)
            ],
            out_specs=pl.BlockSpec((tm, D), lambda i: (i, 0)),
        ),
        compiler_params=pltpu.CompilerParams(
            # Row axis is fully parallel -> shards across the 2 TensorCores on v7x.
            dimension_semantics=("parallel",),
        ),
    )(x2, w_in_t, b_in2, w_out_t, b_out2)

    return out2.reshape(B, P, D)


if __name__ == "__main__":
    # Small, deterministic shapes consistent with the module; d_model chosen as a
    # multiple of 128 so the output block is lane-dense (unmasked vst).
    batch, seq, d_model, d_mlp = 2, 8, 128, 256

    key = jax.random.PRNGKey(0)
    kx, kwin, kwout = jax.random.split(key, 3)

    # Parameter init mirrors torch.randn(...) / sqrt(d_model), zero biases.
    w_in = jax.random.normal(kwin, (d_mlp, d_model), jnp.float32) / jnp.sqrt(
        jnp.float32(d_model))
    b_in = jnp.zeros((d_mlp,), jnp.float32)
    w_out = jax.random.normal(kwout, (d_model, d_mlp), jnp.float32) / jnp.sqrt(
        jnp.float32(d_model))
    b_out = jnp.zeros((d_model,), jnp.float32)
    x = jax.random.normal(kx, (batch, seq, d_model), jnp.float32)

    out = mlp(x, w_in, b_in, w_out, b_out, act_fn=jax.nn.gelu)
    jax.block_until_ready(out)

    # Plain-JAX reference matching the PyTorch einsum formulation.
    h_ref = jnp.einsum('md,bpd->bpm', w_in, x) + b_in
    h_ref = jax.nn.gelu(h_ref)
    ref = jnp.einsum('dm,bpm->bpd', w_out, h_ref) + b_out

    assert out.shape == (batch, seq, d_model)
    assert out.dtype == x.dtype
    assert jnp.allclose(out, ref, atol=1e-3, rtol=1e-3), float(jnp.max(jnp.abs(out - ref)))

    print("KERNEL_OK")
</pallas_src>

<mosaic_0001>
module attributes {stable_mosaic.version = 11 : i64} {
  func.func @_mlp_kernel(%arg0: i32, %arg1: memref<16x128xf32, #tpu.memory_space<vmem>>, %arg2: memref<128x256xf32, #tpu.memory_space<vmem>>, %arg3: memref<1x256xf32, #tpu.memory_space<vmem>>, %arg4: memref<256x128xf32, #tpu.memory_space<vmem>>, %arg5: memref<1x128xf32, #tpu.memory_space<vmem>>, %arg6: memref<16x128xf32, #tpu.memory_space<vmem>>) attributes {dimension_semantics = [#tpu.dimension_semantics<parallel>], iteration_bounds = array<i64: 1>, scalar_prefetch = 0 : i64, scratch_operands = 0 : i64, tpu.core_type = #tpu.core_type<tc>, window_params = [{transform_indices = @transform_0, window_bounds = array<i64: 16, 128>}, {pipeline_mode = #tpu.pipeline_mode<synchronous>, transform_indices = @transform_1, window_bounds = array<i64: 128, 256>}, {pipeline_mode = #tpu.pipeline_mode<synchronous>, transform_indices = @transform_2, window_bounds = array<i64: 1, 256>}, {pipeline_mode = #tpu.pipeline_mode<synchronous>, transform_indices = @transform_3, window_bounds = array<i64: 256, 128>}, {pipeline_mode = #tpu.pipeline_mode<synchronous>, transform_indices = @transform_4, window_bounds = array<i64: 1, 128>}, {transform_indices = @transform_5, window_bounds = array<i64: 16, 128>}]} {
    %c0 = arith.constant 0 : index
    %c0_0 = arith.constant 0 : index
    %0 = vector.load %arg1[%c0, %c0_0] : memref<16x128xf32, #tpu.memory_space<vmem>>, vector<16x128xf32>
    %c0_1 = arith.constant 0 : index
    %c0_2 = arith.constant 0 : index
    %1 = vector.load %arg2[%c0_1, %c0_2] : memref<128x256xf32, #tpu.memory_space<vmem>>, vector<128x256xf32>
    %cst = arith.constant dense<0.000000e+00> : vector<16x256xf32>
    %2 = tpu.matmul %0, %1, %cst {dimension_numbers = #tpu.dot_dimension_numbers<[1], [0], [0], [1], [0, 0, 1, 1], [], []>} : vector<16x128xf32>, vector<128x256xf32>, vector<16x256xf32> -> vector<16x256xf32>
    %c0_3 = arith.constant 0 : index
    %c0_4 = arith.constant 0 : index
    %3 = vector.load %arg3[%c0_3, %c0_4] : memref<1x256xf32, #tpu.memory_space<vmem>>, vector<1x256xf32>
    %4 = vector.broadcast %3 : vector<1x256xf32> to vector<16x256xf32>
    %5 = arith.addf %2, %4 : vector<16x256xf32>
    %6 = arith.mulf %5, %5 : vector<16x256xf32>
    %7 = arith.mulf %5, %6 : vector<16x256xf32>
    %cst_5 = arith.constant 4.471500e-02 : f32
    %8 = vector.broadcast %cst_5 : f32 to vector<16x256xf32>
    %9 = arith.mulf %8, %7 : vector<16x256xf32>
    %10 = arith.addf %5, %9 : vector<16x256xf32>
    %cst_6 = arith.constant 0.797884583 : f32
    %11 = vector.broadcast %cst_6 : f32 to vector<16x256xf32>
    %12 = arith.mulf %11, %10 : vector<16x256xf32>
    %13 = math.tanh %12 : vector<16x256xf32>
    %cst_7 = arith.constant 1.000000e+00 : f32
    %14 = vector.broadcast %cst_7 : f32 to vector<16x256xf32>
    %15 = arith.addf %14, %13 : vector<16x256xf32>
    %cst_8 = arith.constant 5.000000e-01 : f32
    %16 = vector.broadcast %cst_8 : f32 to vector<16x256xf32>
    %17 = arith.mulf %16, %15 : vector<16x256xf32>
    %18 = arith.mulf %5, %17 : vector<16x256xf32>
    %c0_9 = arith.constant 0 : index
    %c0_10 = arith.constant 0 : index
    %19 = vector.load %arg4[%c0_9, %c0_10] : memref<256x128xf32, #tpu.memory_space<vmem>>, vector<256x128xf32>
    %cst_11 = arith.constant dense<0.000000e+00> : vector<16x128xf32>
    %20 = tpu.matmul %18, %19, %cst_11 {dimension_numbers = #tpu.dot_dimension_numbers<[1], [0], [0], [1], [0, 0, 1, 1], [], []>} : vector<16x256xf32>, vector<256x128xf32>, vector<16x128xf32> -> vector<16x128xf32>
    %c0_12 = arith.constant 0 : index
    %c0_13 = arith.constant 0 : index
    %21 = vector.load %arg5[%c0_12, %c0_13] : memref<1x128xf32, #tpu.memory_space<vmem>>, vector<1x128xf32>
    %22 = vector.broadcast %21 : vector<1x128xf32> to vector<16x128xf32>
    %23 = arith.addf %20, %22 : vector<16x128xf32>
    %c0_14 = arith.constant 0 : index
    %c0_15 = arith.constant 0 : index
    %24 = vector.load %arg6[%c0_14, %c0_15] : memref<16x128xf32, #tpu.memory_space<vmem>>, vector<16x128xf32>
    tpu.vector_store %arg6[%c0_14, %c0_15], %23 {strides = array<i32>} : memref<16x128xf32, #tpu.memory_space<vmem>>, vector<16x128xf32>,
    return
  }
  func.func @transform_0(%arg0: i32) -> (i32, i32) {
    %c0_i32 = arith.constant 0 : i32
    %c0_i32_0 = arith.constant 0 : i32
    return %arg0, %c0_i32 : i32, i32
  }
  func.func @transform_1(%arg0: i32) -> (i32, i32) {
    %c0_i32 = arith.constant 0 : i32
    %c0_i32_0 = arith.constant 0 : i32
    %c0_i32_1 = arith.constant 0 : i32
    return %c0_i32, %c0_i32_0 : i32, i32
  }
  func.func @transform_2(%arg0: i32) -> (i32, i32) {
    %c0_i32 = arith.constant 0 : i32
    %c0_i32_0 = arith.constant 0 : i32
    %c0_i32_1 = arith.constant 0 : i32
    return %c0_i32, %c0_i32_0 : i32, i32
  }
  func.func @transform_3(%arg0: i32) -> (i32, i32) {
    %c0_i32 = arith.constant 0 : i32
    %c0_i32_0 = arith.constant 0 : i32
    %c0_i32_1 = arith.constant 0 : i32
    return %c0_i32, %c0_i32_0 : i32, i32
  }
  func.func @transform_4(%arg0: i32) -> (i32, i32) {
    %c0_i32 = arith.constant 0 : i32
    %c0_i32_0 = arith.constant 0 : i32
    %c0_i32_1 = arith.constant 0 : i32
    return %c0_i32, %c0_i32_0 : i32, i32
  }
  func.func @transform_5(%arg0: i32) -> (i32, i32) {
    %c0_i32 = arith.constant 0 : i32
    %c0_i32_0 = arith.constant 0 : i32
    return %arg0, %c0_i32 : i32, i32
  }
}

</mosaic_0001>

<llo_original>
// kernel: mlp.1
$region0: #{mlp.1}
  #allocation0 [shape = 'u32[]', space=smem, size = 0x4, offset = 0x4, fixed_abs, tag = 'smem constant byte address 0x4 - core index']
  #allocation1 [shape = 'u32[144,128]{1,0:T(1,128)}', space=vmem, size = 0x12000, scoped, tag = 'internal scratch']
  %s0 = inlined_call_operand.vmem [shape: f32[16,128], index: 0, kind: input, shape index: {}]
  %s1 = inlined_call_operand.vmem [shape: f32[128,256], index: 1, kind: input, shape index: {}]
  %s2 = inlined_call_operand.vmem [shape: f32[1,256], index: 2, kind: input, shape index: {}]
  %s3 = inlined_call_operand.vmem [shape: f32[256,128], index: 3, kind: input, shape index: {}]
  %s4 = inlined_call_operand.vmem [shape: f32[1,128], index: 4, kind: input, shape index: {}]
  %s5 = inlined_call_operand.hbm [shape: f32[16,128], index: 5, kind: output, shape index: {}]
  %s6 = sld [smem:[#allocation0]]
  $region30: #{mlp.1} parent=0
    _
  %s8 = ssub.s32 1, %s6
  %s9 = scalar_select 0, %s8, %s6
  $region1: #{mlp.1} parent=0
    #allocation2 [shape = 'u8[8192]{0}', space=vmem, size = 0x2000, scoped, tag = 'output window, operand 0, single buffered']
    #allocation3 [shape = 's32[1]{0}', space=sflag, size = 0x4, scoped, tag = 'scoped memory for mlp.1']
    %10 = vsyncpa [#allocation3], 0
    // Predicated region
    $region2: #{mlp.1} parent=1 // pred_check
      _
    $region3: #{mlp.1} parent=1 // pred_check_branch
      %12 = sbr.rel (0) target = $region5
    $region4: #{mlp.1} parent=1 // pred_region
      _
    $region5: #{mlp.1} parent=1 // pred_fallthru
      _
    // Predicated region
    $region6: #{mlp.1} parent=1 // pred_check
      _
    $region7: #{mlp.1} parent=1 // pred_check_branch
      %14 = sbr.rel (0) target = $region9
    $region8: #{mlp.1} parent=1 // pred_region
      _
    $region9: #{mlp.1} parent=1 // pred_fallthru
      _
    // Predicated region
    $region10: #{mlp.1} parent=1 // pred_check
      _
    $region11: #{mlp.1} parent=1 // pred_check_branch
      %16 = sbr.rel (0) target = $region13
    $region12: #{mlp.1} parent=1 // pred_region
      _
    $region13: #{mlp.1} parent=1 // pred_fallthru
      _
    // Predicated region
    $region14: #{mlp.1} parent=1 // pred_check
      _
    $region15: #{mlp.1} parent=1 // pred_check_branch
      %18 = sbr.rel (0) target = $region17
    $region16: #{mlp.1} parent=1 // pred_region
      _
    $region17: #{mlp.1} parent=1 // pred_fallthru
      _
    // Predicated region
    $region18: #{mlp.1} parent=1 // pred_check
      _
    $region19: #{mlp.1} parent=1 // pred_check_branch
      %20 = sbr.rel (0) target = $region21
    $region20: #{mlp.1} parent=1 // pred_region
      _
    $region21: #{mlp.1} parent=1 // pred_fallthru
      _
    %v21 = vld [vmem:[%s0] sm:$0xff]
    %v22 = vld [vmem:[%s0 + $0x8] sm:$0xff]
    %v23 = vld [vmem:[%s1] sm:$0xff]
    %v24 = vld [vmem:[%s1 + $0x8] sm:$0xff]
    %v25 = vld [vmem:[%s1 + $0x10] sm:$0xff]
    %v26 = vld [vmem:[%s1 + $0x18] sm:$0xff]
    %v27 = vld [vmem:[%s1 + $0x20] sm:$0xff]
    %v28 = vld [vmem:[%s1 + $0x28] sm:$0xff]
    %v29 = vld [vmem:[%s1 + $0x30] sm:$0xff]
    %v30 = vld [vmem:[%s1 + $0x38] sm:$0xff]
    %v31 = vld [vmem:[%s1 + $0x40] sm:$0xff]
    %v32 = vld [vmem:[%s1 + $0x48] sm:$0xff]
    %v33 = vld [vmem:[%s1 + $0x50] sm:$0xff]
    %v34 = vld [vmem:[%s1 + $0x58] sm:$0xff]
    %v35 = vld [vmem:[%s1 + $0x60] sm:$0xff]
    %v36 = vld [vmem:[%s1 + $0x68] sm:$0xff]
    %v37 = vld [vmem:[%s1 + $0x70] sm:$0xff]
    %v38 = vld [vmem:[%s1 + $0x78] sm:$0xff]
    %v39 = vld [vmem:[%s1 + $0x80] sm:$0xff]
    %v40 = vld [vmem:[%s1 + $0x88] sm:$0xff]
    %v41 = vld [vmem:[%s1 + $0x90] sm:$0xff]
    %v42 = vld [vmem:[%s1 + $0x98] sm:$0xff]
    %v43 = vld [vmem:[%s1 + $0xa0] sm:$0xff]
    %v44 = vld [vmem:[%s1 + $0xa8] sm:$0xff]
    %v45 = vld [vmem:[%s1 + $0xb0] sm:$0xff]
    %v46 = vld [vmem:[%s1 + $0xb8] sm:$0xff]
    %v47 = vld [vmem:[%s1 + $0xc0] sm:$0xff]
    %v48 = vld [vmem:[%s1 + $0xc8] sm:$0xff]
    %v49 = vld [vmem:[%s1 + $0xd0] sm:$0xff]
    %v50 = vld [vmem:[%s1 + $0xd8] sm:$0xff]
    %v51 = vld [vmem:[%s1 + $0xe0] sm:$0xff]
    %v52 = vld [vmem:[%s1 + $0xe8] sm:$0xff]
    %v53 = vld [vmem:[%s1 + $0xf0] sm:$0xff]
    %v54 = vld [vmem:[%s1 + $0xf8] sm:$0xff]
    %v55 = vld [vmem:[%s2] sm:$0x3]
    %v57 = vlaneseq
    %v58 = vshrl.u32 %v57, 7
    %v59 = vsub.s32 0, %v58
    %v60 = vrot.slane %v55, %v59
    %v61 = vlaneseq
    %v62 = vshrl.u32 %v61, 7
    %v63 = vsub.s32 1, %v62
    %v64 = vrot.slane %v55, %v63
    %67 = vmatprep.subr.mxu0 %v54
    %68 = vmatpush1.msra.mxu0 %v53
    %69 = vmatprep.subr.mxu0 %v52
    %70 = vmatpush1.msra.mxu0 %v51
    %71 = vmatprep.subr.mxu0 %v50
    %72 = vmatpush1.msra.mxu0 %v49
    %73 = vmatprep.subr.mxu0 %v48
    %74 = vmatpush1.msra.mxu0 %v47
    %75 = vmatprep.subr.mxu0 %v46
    %76 = vmatpush1.msra.mxu0 %v45
    %77 = vmatprep.subr.mxu0 %v44
    %78 = vmatpush1.msra.mxu0 %v43
    %79 = vmatprep.subr.mxu0 %v42
    %80 = vmatpush1.msra.mxu0 %v41
    %81 = vmatprep.subr.mxu0 %v40
    %82 = vmatpush1.msra.mxu0 %v39
    %83 = vmatprep.subr.mxu0 %v38
    %84 = vmatpush1.msra.mxu0 %v37
    %85 = vmatprep.subr.mxu0 %v36
    %86 = vmatpush1.msra.mxu0 %v35
    %87 = vmatprep.subr.mxu0 %v34
    %88 = vmatpush1.msra.mxu0 %v33
    %89 = vmatprep.subr.mxu0 %v32
    %90 = vmatpush1.msra.mxu0 %v31
    %91 = vmatprep.subr.mxu0 %v30
    %92 = vmatpush1.msra.mxu0 %v29
    %93 = vmatprep.subr.mxu0 %v28
    %94 = vmatpush1.msra.mxu0 %v27
    %95 = vmatprep.subr.mxu0 %v26
    %96 = vmatpush1.msra.mxu0 %v25
    %97 = vmatprep.subr.mxu0 %v24
    %98 = vmatpush1.msra.mxu0 %v23
    %99 = vmatprep.subr.mxu0 0.0
    %100 = vmatpush2.msra.mxu0 0.0
    %101 = vmatprep.subr.mxu0 0.0
    %102 = vmatpush2.msra.mxu0 0.0
    %103 = vmatprep.subr.mxu0 0.0
    %104 = vmatpush2.msra.mxu0 0.0
    %105 = vmatprep.subr.mxu0 0.0
    %106 = vmatpush2.msra.mxu0 0.0
    %107 = vmatprep.subr.mxu0 0.0
    %108 = vmatpush2.msra.mxu0 0.0
    %109 = vmatprep.subr.mxu0 0.0
    %110 = vmatpush2.msra.mxu0 0.0
    %111 = vmatprep.subr.mxu0 0.0
    %112 = vmatpush2.msra.mxu0 0.0
    %113 = vmatprep.subr.mxu0 0.0
    %114 = vmatpush2.msra.mxu0 0.0
    %115 = vmatprep.subr.mxu0 0.0
    %116 = vmatpush2.msra.mxu0 0.0
    %117 = vmatprep.subr.mxu0 0.0
    %118 = vmatpush2.msra.mxu0 0.0
    %119 = vmatprep.subr.mxu0 0.0
    %120 = vmatpush2.msra.mxu0 0.0
    %121 = vmatprep.subr.mxu0 0.0
    %122 = vmatpush2.msra.mxu0 0.0
    %123 = vmatprep.subr.mxu0 0.0
    %124 = vmatpush2.msra.mxu0 0.0
    %125 = vmatprep.subr.mxu0 0.0
    %126 = vmatpush2.msra.mxu0 0.0
    %127 = vmatprep.subr.mxu0 0.0
    %128 = vmatpush2.msra.mxu0 0.0
    %129 = vmatprep.subr.mxu0 0.0
    %130 = vmatpush2.msra.mxu0 0.0
    %131 = vmatprep.mubr.f32.mxu0 0.0
    %132 = vmatmul.mubr.f32.gmra.mxu0 %v21
    %v133 = vpop.f32.mrf.mxu0
    %v134 = vadd.f32 %v60, %v133
    %v135 = vpop.f32.mrf.mxu0
    %v136 = vadd.f32 %v64, %v135
    %137 = vmatprep.mubr.f32.mxu0 0.0
    %138 = vmatmul.mubr.f32.gmra.mxu0 %v22
    %v139 = vpop.f32.mrf.mxu0
    %v140 = vadd.f32 %v60, %v139
    %v141 = vpop.f32.mrf.mxu0
    %v142 = vadd.f32 %v64, %v141
    %143 = vdwg.mxu0
    %v144 = vmul.f32 %v134, %v134
    %v145 = vmul.f32 %v136, %v136
    %v146 = vmul.f32 %v140, %v140
    %v147 = vmul.f32 %v142, %v142
    %v148 = vmul.f32 %v134, %v144
    %v149 = vmul.f32 %v136, %v145
    %v150 = vmul.f32 %v140, %v146
    %v151 = vmul.f32 %v142, %v147
    %v152 = vmul.f32 %v148, 0.044715
    %v153 = vmul.f32 %v149, 0.044715
    %v154 = vmul.f32 %v150, 0.044715
    %v155 = vmul.f32 %v151, 0.044715
    %v156 = vadd.f32 %v134, %v152
    %v157 = vadd.f32 %v136, %v153
    %v158 = vadd.f32 %v140, %v154
    %v159 = vadd.f32 %v142, %v155
    %v160 = vmul.f32 %v156, 0.7978846
    %v161 = vmul.f32 %v157, 0.7978846
    %v162 = vmul.f32 %v158, 0.7978846
    %v163 = vmul.f32 %v159, 0.7978846
    %v164 = vtanh.pop %v160
    %v165 = vtanh.pop %v161
    %v166 = vtanh.pop %v162
    %v167 = vtanh.pop %v163
    %v168 = vadd.f32 %v164, 1.0
    %v169 = vadd.f32 %v165, 1.0
    %v170 = vadd.f32 %v166, 1.0
    %v171 = vadd.f32 %v167, 1.0
    %v172 = vmul.f32 %v168, 0.5
    %v173 = vmul.f32 %v169, 0.5
    %v174 = vmul.f32 %v170, 0.5
    %v175 = vmul.f32 %v171, 0.5
    %v176 = vmul.f32 %v134, %v172
    %v177 = vmul.f32 %v136, %v173
    %v178 = vmul.f32 %v140, %v174
    %v179 = vmul.f32 %v142, %v175
    %v180 = vld [vmem:[%s3] sm:$0xff]
    %v181 = vld [vmem:[%s3 + $0x8] sm:$0xff]
    %v182 = vld [vmem:[%s3 + $0x10] sm:$0xff]
    %v183 = vld [vmem:[%s3 + $0x18] sm:$0xff]
    %v184 = vld [vmem:[%s3 + $0x20] sm:$0xff]
    %v185 = vld [vmem:[%s3 + $0x28] sm:$0xff]
    %v186 = vld [vmem:[%s3 + $0x30] sm:$0xff]
    %v187 = vld [vmem:[%s3 + $0x38] sm:$0xff]
    %v188 = vld [vmem:[%s3 + $0x40] sm:$0xff]
    %v189 = vld [vmem:[%s3 + $0x48] sm:$0xff]
    %v190 = vld [vmem:[%s3 + $0x50] sm:$0xff]
    %v191 = vld [vmem:[%s3 + $0x58] sm:$0xff]
    %v192 = vld [vmem:[%s3 + $0x60] sm:$0xff]
    %v193 = vld [vmem:[%s3 + $0x68] sm:$0xff]
    %v194 = vld [vmem:[%s3 + $0x70] sm:$0xff]
    %v195 = vld [vmem:[%s3 + $0x78] sm:$0xff]
    %v196 = vld [vmem:[%s3 + $0x80] sm:$0xff]
    %v197 = vld [vmem:[%s3 + $0x88] sm:$0xff]
    %v198 = vld [vmem:[%s3 + $0x90] sm:$0xff]
    %v199 = vld [vmem:[%s3 + $0x98] sm:$0xff]
    %v200 = vld [vmem:[%s3 + $0xa0] sm:$0xff]
    %v201 = vld [vmem:[%s3 + $0xa8] sm:$0xff]
    %v202 = vld [vmem:[%s3 + $0xb0] sm:$0xff]
    %v203 = vld [vmem:[%s3 + $0xb8] sm:$0xff]
    %v204 = vld [vmem:[%s3 + $0xc0] sm:$0xff]
    %v205 = vld [vmem:[%s3 + $0xc8] sm:$0xff]
    %v206 = vld [vmem:[%s3 + $0xd0] sm:$0xff]
    %v207 = vld [vmem:[%s3 + $0xd8] sm:$0xff]
    %v208 = vld [vmem:[%s3 + $0xe0] sm:$0xff]
    %v209 = vld [vmem:[%s3 + $0xe8] sm:$0xff]
    %v210 = vld [vmem:[%s3 + $0xf0] sm:$0xff]
    %v211 = vld [vmem:[%s3 + $0xf8] sm:$0xff]
    %v212 = vld [vmem:[%s4] sm:$0x1]
    %v214 = vlaneseq
    %v215 = vshrl.u32 %v214, 7
    %v216 = vsub.s32 0, %v215
    %v217 = vrot.slane %v212, %v216
    %219 = vmatprep.subr.mxu0 0.0
    %220 = vmatpush1.msra.mxu0 %v195
    %221 = vmatprep.subr.mxu0 0.0
    %222 = vmatpush1.msra.mxu0 %v194
    %223 = vmatprep.subr.mxu0 0.0
    %224 = vmatpush1.msra.mxu0 %v193
    %225 = vmatprep.subr.mxu0 0.0
    %226 = vmatpush1.msra.mxu0 %v192
    %227 = vmatprep.subr.mxu0 0.0
    %228 = vmatpush1.msra.mxu0 %v191
    %229 = vmatprep.subr.mxu0 0.0
    %230 = vmatpush1.msra.mxu0 %v190
    %231 = vmatprep.subr.mxu0 0.0
    %232 = vmatpush1.msra.mxu0 %v189
    %233 = vmatprep.subr.mxu0 0.0
    %234 = vmatpush1.msra.mxu0 %v188
    %235 = vmatprep.subr.mxu0 0.0
    %236 = vmatpush1.msra.mxu0 %v187
    %237 = vmatprep.subr.mxu0 0.0
    %238 = vmatpush1.msra.mxu0 %v186
    %239 = vmatprep.subr.mxu0 0.0
    %240 = vmatpush1.msra.mxu0 %v185
    %241 = vmatprep.subr.mxu0 0.0
    %242 = vmatpush1.msra.mxu0 %v184
    %243 = vmatprep.subr.mxu0 0.0
    %244 = vmatpush1.msra.mxu0 %v183
    %245 = vmatprep.subr.mxu0 0.0
    %246 = vmatpush1.msra.mxu0 %v182
    %247 = vmatprep.subr.mxu0 0.0
    %248 = vmatpush1.msra.mxu0 %v181
    %249 = vmatprep.subr.mxu0 0.0
    %250 = vmatpush1.msra.mxu0 %v180
    %251 = vmatprep.subr.mxu0 0.0
    %252 = vmatpush2.msra.mxu0 %v211
    %253 = vmatprep.subr.mxu0 0.0
    %254 = vmatpush2.msra.mxu0 %v210
    %255 = vmatprep.subr.mxu0 0.0
    %256 = vmatpush2.msra.mxu0 %v209
    %257 = vmatprep.subr.mxu0 0.0
    %258 = vmatpush2.msra.mxu0 %v208
    %259 = vmatprep.subr.mxu0 0.0
    %260 = vmatpush2.msra.mxu0 %v207
    %261 = vmatprep.subr.mxu0 0.0
    %262 = vmatpush2.msra.mxu0 %v206
    %263 = vmatprep.subr.mxu0 0.0
    %264 = vmatpush2.msra.mxu0 %v205
    %265 = vmatprep.subr.mxu0 0.0
    %266 = vmatpush2.msra.mxu0 %v204
    %267 = vmatprep.subr.mxu0 0.0
    %268 = vmatpush2.msra.mxu0 %v203
    %269 = vmatprep.subr.mxu0 0.0
    %270 = vmatpush2.msra.mxu0 %v202
    %271 = vmatprep.subr.mxu0 0.0
    %272 = vmatpush2.msra.mxu0 %v201
    %273 = vmatprep.subr.mxu0 0.0
    %274 = vmatpush2.msra.mxu0 %v200
    %275 = vmatprep.subr.mxu0 0.0
    %276 = vmatpush2.msra.mxu0 %v199
    %277 = vmatprep.subr.mxu0 0.0
    %278 = vmatpush2.msra.mxu0 %v198
    %279 = vmatprep.subr.mxu0 0.0
    %280 = vmatpush2.msra.mxu0 %v197
    %281 = vmatprep.subr.mxu0 0.0
    %282 = vmatpush2.msra.mxu0 %v196
    %283 = vmatprep.mubr.f32.mxu0 %v177
    %284 = vmatmul.mubr.f32.gmra.mxu0 %v176
    %v285 = vpop.f32.mrf.mxu0
    %v286 = vadd.f32 %v217, %v285
    %v287 = vpop.f32.mrf.mxu0
    %288 = vmatprep.mubr.f32.mxu0 %v179
    %289 = vmatmul.mubr.f32.gmra.mxu0 %v178
    %v290 = vpop.f32.mrf.mxu0
    %v291 = vadd.f32 %v217, %v290
    %v292 = vpop.f32.mrf.mxu0
    %293 = vdwg.mxu0
    %294 = vst [vmem:[#allocation2] sm:$0xff] %v286
    %295 = vst [vmem:[#allocation2 + $0x8] sm:$0xff] %v291
    // Predicated region
    $region22: #{mlp.1} parent=1 // pred_check
      _
    $region23: #{mlp.1} parent=1 // pred_check_branch
      %297 = sbr.rel (0) target = $region25
    $region24: #{mlp.1} parent=1 // pred_region
      %s299 = ssub.s32 256, 256
      %300 = vsyncadd [#allocation3], %s299
      %s301 = sshll.u32 [#allocation2], 4
      %s302 = int_to_ptr.vmem [resolvable:$true] %s301
      %307 = dma.vmem_to_hbm [thread:$0]  %s302, 256, %s5, [#allocation3], 128, 128, 8
    $region25: #{mlp.1} parent=1 // pred_fallthru
      _
    // Predicated region
    $region26: #{mlp.1} parent=1 // pred_check
      _
    $region27: #{mlp.1} parent=1 // pred_check_branch
      %309 = sbr.rel (0) target = $region29
    $region28: #{mlp.1} parent=1 // pred_region
      %310 = dma.done [#allocation3], 256
    $region29: #{mlp.1} parent=1 // pred_fallthru
      _
    %311 = vsyncpa [#allocation3], 1

</llo_original>
